<compile_context>
chip_gen: v7x
topology: tpu7x:2x2x1
jax: 0.10.0
libtpu: 0.0.40
codegen_flags: <defaults>
</compile_context>

<pallas_src>
import jax
import jax.numpy as jnp
from jax.experimental import pallas as pl
from jax.experimental.pallas import tpu as pltpu


# ----------------------------------------------------------------------------
# Stand-in body dimensions
# ----------------------------------------------------------------------------
_HW1, _C1IN, _C1OUT = 16, 4, 16            # conv1: 16x16 spatial, 4 -> 16 channels
_HW2, _C2IN, _C2OUT = 8, 16, 32            # conv2:  8x8  spatial, 16 -> 32 channels
_K1 = _HW1 * _C1IN                         # 64   one input row (w*Cin + ci)
_K2 = _HW2 * _C2IN                         # 128  one conv2 input row
_KB1 = 3 * _K1                             # 192  conv1 fused-K (3 dy bands)
_KB2 = 3 * _K2                             # 384  conv2 fused-K
_N1 = 2 * (_HW1 // 2) * _C1OUT             # 256  conv1 matmul width (parity-split)
_N2 = 2 * (_HW2 // 2) * _C2OUT             # 256  conv2 matmul width (parity-split)
_FC_BLK = (_HW2 // 2) * _C2OUT             # 128  fc-input lanes per pooled row
_FEAT = 128                                # body feature width fed to the 1-wide head


# ----------------------------------------------------------------------------
# Fused kernel: conv1+ReLU+pool -> conv2+ReLU+pool -> body FC+ReLU -> 128->1 head
# One grid step processes a batch block of BB samples, batch stacked into M.
# ----------------------------------------------------------------------------
def _pm_single_net_kernel(x_ref, w12_ref, wfc_ref, bias_ref, o_ref, hbuf_ref):
    BB = o_ref.shape[0]                                    # samples in this block

    # ---- conv1: one K=192 bf16 MXU dot over the whole block + bias + ReLU ----
    y1 = jnp.dot(x_ref[...], w12_ref[0:_KB1, :],
                 preferred_element_type=jnp.float32)       # [BB*16, 256]
    y1 = jnp.maximum(y1 + bias_ref[0:1, :], 0.0)

    # ---- 2x2 maxpool #1 ----
    # horizontal half: parity-split weight columns -> lane-dense max of halves.
    hbuf_ref[...] = jnp.maximum(y1[:, : _N1 // 2], y1[:, _N1 // 2:])     # [BB*16,128]
    # vertical half: stride-2 row loads (adjacent row pairs), one max.
    p1 = jnp.maximum(hbuf_ref[pl.ds(0, BB * _HW2, stride=2), :],
                     hbuf_ref[pl.ds(1, BB * _HW2, stride=2), :])         # [BB*8, 128]

    # ---- conv2 LHS: per-sample zero-padded 3-row windows concatenated along K ----
    p1 = p1.reshape(BB, _HW2, _K2)                         # leading split (8 % 8 == 0)
    zrow = jnp.zeros((BB, 1, _K2), jnp.float32)
    p1z = jnp.concatenate([zrow, p1, zrow], axis=1)        # [BB, 10, 128]
    lhs2 = jnp.concatenate(
        [p1z[:, 0:_HW2, :], p1z[:, 1:_HW2 + 1, :], p1z[:, 2:_HW2 + 2, :]],
        axis=-1).reshape(BB * _HW2, _KB2).astype(jnp.bfloat16)           # [BB*8, 384]

    # ---- conv2: one K=384 dot + bias + ReLU ----
    y2 = jnp.dot(lhs2, w12_ref[_KB1:_KB1 + _KB2, :],
                 preferred_element_type=jnp.float32)       # [BB*8, 256]
    y2 = jnp.maximum(y2 + bias_ref[1:2, :], 0.0)

    # ---- 2x2 maxpool #2, fused with the FC-input gather ----
    # horizontal half (lane max), one contiguous aligned store into the scratch.
    hbuf_ref[0:BB * _HW2, :] = jnp.maximum(y2[:, : _N2 // 2], y2[:, _N2 // 2:])
    # vertical half: per pooled row i, gather rows (b, 2i)/(b, 2i+1) with stride-8
    # loads, max them, and place the 4 pooled rows side by side in the FC lanes.
    pieces = []
    for i in range(_HW2 // 2):                              # 4 pooled rows (static)
        pe = hbuf_ref[pl.ds(2 * i, BB, stride=_HW2), :]     # [BB, 128]
        po = hbuf_ref[pl.ds(2 * i + 1, BB, stride=_HW2), :]
        pieces.append(jnp.maximum(pe, po))
    lhs_fc = jnp.concatenate(pieces, axis=-1).astype(jnp.bfloat16)       # [BB, 512]

    # ---- body FC: one [BB,512]x[512,128] dot + bias + ReLU ----
    hid = jnp.dot(lhs_fc, wfc_ref[...], preferred_element_type=jnp.float32)
    hid = jnp.maximum(hid + bias_ref[2:3, 0:_FEAT], 0.0)    # [BB, 128]

    # ---- 128 -> 1 head: VPU multiply + lane reduction, single [BB,1] store ----
    yb = (jnp.sum(hid * bias_ref[3:4, 0:_FEAT], axis=-1, keepdims=True)
          + bias_ref[4:5, 0:1])
    o_ref[...] = yb.astype(o_ref.dtype)


# ----------------------------------------------------------------------------
# One-time weight preparation (hoisted out of the forward hot path)
# ----------------------------------------------------------------------------
def _conv3x3_to_banded(w_oihw, width):
    """PyTorch conv weight [Cout, Cin, 3, 3] (stride 1, pad 1) -> banded matmul
    weight [3*width*Cin, 2*(width//2)*Cout].

    Row index    : dy*(width*Cin) + w_in*Cin + ci
    Column index : p*(width//2)*Cout + j*Cout + co   (output column w_out = 2j + p)
    Width padding folds into the band structure; the parity split makes the
    horizontal 2x2-pool a lane-wise max of the two 128-lane halves.
    """
    cout, cin, kh, kw = w_oihw.shape
    half = width // 2
    dy = jnp.arange(kh).reshape(kh, 1, 1, 1, 1, 1)
    w_in = jnp.arange(width).reshape(1, width, 1, 1, 1, 1)
    ci = jnp.arange(cin).reshape(1, 1, cin, 1, 1, 1)
    p = jnp.arange(2).reshape(1, 1, 1, 2, 1, 1)
    j = jnp.arange(half).reshape(1, 1, 1, 1, half, 1)
    co = jnp.arange(cout).reshape(1, 1, 1, 1, 1, cout)
    dx = w_in - (2 * j + p) + 1                              # kernel column offset
    valid = (dx >= 0) & (dx < kw)
    vals = w_oihw[co, ci, dy, jnp.clip(dx, 0, kw - 1)]       # [3, W, Cin, 2, W/2, Cout]
    banded = jnp.where(valid, vals, 0.0)
    return banded.reshape(kh * width * cin, 2 * half * cout)


def init_params(key):
    """Reference (PyTorch-layout) parameters for the stand-in Body + fc head."""
    ks = jax.random.split(key, 8)

    def w_init(k, shape, fan_in, scale=1.0):
        return scale * jax.random.normal(k, shape, jnp.float32) / jnp.sqrt(fan_in)

    return {
        "conv1_w": w_init(ks[0], (_C1OUT, _C1IN, 3, 3), _C1IN * 9),
        "conv1_b": w_init(ks[1], (_C1OUT,), 1.0, scale=0.1),
        "conv2_w": w_init(ks[2], (_C2OUT, _C2IN, 3, 3), _C2IN * 9),
        "conv2_b": w_init(ks[3], (_C2OUT,), 1.0, scale=0.1),
        "fc_body_w": w_init(ks[4], (4 * _FC_BLK, _FEAT), 4 * _FC_BLK),
        "fc_body_b": w_init(ks[5], (_FEAT,), 1.0, scale=0.1),
        "fc_w": w_init(ks[6], (_FEAT, 1), _FEAT),
        "fc_b": w_init(ks[7], (1,), 1.0, scale=0.1),
    }


def prepare_kernel_params(p):
    """All weight-side reshapes / permutes / packing, done once at init time.

    Produces 3 arrays (4 DMA descriptors per call incl. activations):
      w12  [576,256] bf16 : conv1 banded [192,256] stacked over conv2 banded [384,256]
      wfc  [512,128] bf16 : body-FC weight, rows permuted to pooled (i, j, c) order
      bias [8,256]   f32  : row0=conv1 bias (tiled), row1=conv2 bias (tiled),
                            row2[:128]=fc bias, row3[:128]=head weight, row4[0]=head bias
    """
    wt1 = _conv3x3_to_banded(p["conv1_w"], _HW1)             # [192, 256]
    wt2 = _conv3x3_to_banded(p["conv2_w"], _HW2)             # [384, 256]
    w12 = jnp.concatenate([wt1, wt2], axis=0).astype(jnp.bfloat16)

    # Body-FC rows permuted from the reference NCHW flatten order (c*16 + i*4 + j)
    # to the kernel's pooled (row i, col j, channel c) order (i*128 + j*32 + c).
    half = _HW2 // 2
    i_idx = jnp.arange(half).reshape(half, 1, 1)
    j_idx = jnp.arange(half).reshape(1, half, 1)
    c_idx = jnp.arange(_C2OUT).reshape(1, 1, _C2OUT)
    perm = (c_idx * (half * half) + i_idx * half + j_idx).reshape(-1)
    wfc = p["fc_body_w"][perm, :].astype(jnp.bfloat16)       # [512, 128]

    bias = jnp.zeros((8, _N1), jnp.float32)
    bias = bias.at[0, :].set(jnp.tile(p["conv1_b"], _N1 // _C1OUT))
    bias = bias.at[1, :].set(jnp.tile(p["conv2_b"], _N2 // _C2OUT))
    bias = bias.at[2, :_FEAT].set(p["fc_body_b"])
    bias = bias.at[3, :_FEAT].set(p["fc_w"].reshape(_FEAT))
    bias = bias.at[4, 0].set(p["fc_b"][0])
    return {"w12": w12, "wfc": wfc, "bias": bias}


# ----------------------------------------------------------------------------
# Forward pass (one pallas_call) + pure-JAX reference
# ----------------------------------------------------------------------------
def _pick_block_b(batch):
    """Samples per grid step.  Prefer >=2 sublane-aligned blocks (multiple of 8,
    so the [BB,1] output block keeps an aligned layout and both v7x TensorCores
    get work); otherwise process the whole batch as one block."""
    for bb in (16, 8, 32, 64):
        if batch % bb == 0 and batch // bb >= 2:
            return bb
    return batch


def pm_single_net_forward(kparams, x):
    """x: NCHW [B, 4, 16, 16] -> [B, 1], whole network in a single fused kernel."""
    B = x.shape[0]
    bb = _pick_block_b(B)
    grid = (B // bb,)

    # Only per-call layout glue (tiny): NCHW -> NHWC rows -> zero-pad H -> the 3
    # vertical conv taps concatenated along K -> lane-dense [B*16, 192] bf16 LHS.
    xr = jnp.transpose(x, (0, 2, 3, 1)).reshape(B, _HW1, _K1)
    xp = jnp.pad(xr, ((0, 0), (1, 1), (0, 0)))                         # [B, 18, 64]
    lhs1 = jnp.concatenate(
        [xp[:, 0:_HW1, :], xp[:, 1:_HW1 + 1, :], xp[:, 2:_HW1 + 2, :]],
        axis=-1).reshape(B * _HW1, _KB1).astype(jnp.bfloat16)          # [B*16, 192]

    return pl.pallas_call(
        _pm_single_net_kernel,
        out_shape=jax.ShapeDtypeStruct((B, 1), jnp.float32),
        grid_spec=pltpu.PrefetchScalarGridSpec(
            num_scalar_prefetch=0,
            grid=grid,
            in_specs=[
                pl.BlockSpec((bb * _HW1, _KB1), lambda g: (g, 0)),     # activations
                pl.BlockSpec((_KB1 + _KB2, _N1), lambda g: (0, 0)),    # conv weights
                pl.BlockSpec((4 * _FC_BLK, _FEAT), lambda g: (0, 0)),  # fc weight
                pl.BlockSpec((8, _N1), lambda g: (0, 0)),              # biases + head
            ],
            out_specs=pl.BlockSpec((bb, 1), lambda g: (g, 0)),
            scratch_shapes=[pltpu.VMEM((bb * _HW1, _N1 // 2), jnp.float32)],
        ),
        compiler_params=pltpu.CompilerParams(
            dimension_semantics=("parallel",)),
    )(lhs1, kparams["w12"], kparams["wfc"], kparams["bias"])


def pm_single_net_reference(params, x):
    """Pure-JAX (f32, NCHW) reference for validation."""
    def conv_ref(x, w, b):
        y = jax.lax.conv_general_dilated(
            x, w, window_strides=(1, 1), padding=((1, 1), (1, 1)),
            dimension_numbers=("NCHW", "OIHW", "NCHW"))
        return jax.nn.relu(y + b[None, :, None, None])

    def pool_ref(x):
        return jax.lax.reduce_window(
            x, -jnp.inf, jax.lax.max, (1, 1, 2, 2), (1, 1, 2, 2), "VALID")

    B = x.shape[0]
    y = conv_ref(x, params["conv1_w"], params["conv1_b"])
    y = pool_ref(y)
    y = conv_ref(y, params["conv2_w"], params["conv2_b"])
    y = pool_ref(y)
    y = y.reshape(B, -1)
    y = jax.nn.relu(y @ params["fc_body_w"] + params["fc_body_b"])
    return y @ params["fc_w"] + params["fc_b"]


if __name__ == "__main__":
    key = jax.random.PRNGKey(0)
    kx, kp = jax.random.split(key)
    x = jax.random.normal(kx, (2, _C1IN, _HW1, _HW1), jnp.float32)
    params = init_params(kp)
    kparams = prepare_kernel_params(params)   # weight layout/packing: once, off hot path

    fwd = jax.jit(pm_single_net_forward)
    out = jax.block_until_ready(fwd(kparams, x))
    assert out.shape == (2, 1), out.shape

    ref = jax.block_until_ready(pm_single_net_reference(params, x))
    max_err = float(jnp.max(jnp.abs(out - ref)))
    assert max_err < 5e-2, f"mismatch vs reference: {max_err}"  # bf16 MXU operands

    print("KERNEL_OK")
</pallas_src>

<mosaic_0001>
module attributes {stable_mosaic.version = 11 : i64} {
  func.func @_pm_single_net_kernel(%arg0: i32, %arg1: memref<32x192xbf16, #tpu.memory_space<vmem>>, %arg2: memref<576x256xbf16, #tpu.memory_space<vmem>>, %arg3: memref<512x128xbf16, #tpu.memory_space<vmem>>, %arg4: memref<8x256xf32, #tpu.memory_space<vmem>>, %arg5: memref<2x1xf32, #tpu.memory_space<vmem>>, %arg6: memref<32x128xf32, #tpu.memory_space<vmem>>) attributes {dimension_semantics = [#tpu.dimension_semantics<parallel>], iteration_bounds = array<i64: 1>, scalar_prefetch = 0 : i64, scratch_operands = 1 : i64, tpu.core_type = #tpu.core_type<tc>, window_params = [{transform_indices = @transform_0, window_bounds = array<i64: 32, 192>}, {pipeline_mode = #tpu.pipeline_mode<synchronous>, transform_indices = @transform_1, window_bounds = array<i64: 576, 256>}, {pipeline_mode = #tpu.pipeline_mode<synchronous>, transform_indices = @transform_2, window_bounds = array<i64: 512, 128>}, {pipeline_mode = #tpu.pipeline_mode<synchronous>, transform_indices = @transform_3, window_bounds = array<i64: 8, 256>}, {transform_indices = @transform_4, window_bounds = array<i64: 2, 1>}]} {
    %c0 = arith.constant 0 : index
    %c0_0 = arith.constant 0 : index
    %0 = vector.load %arg1[%c0, %c0_0] : memref<32x192xbf16, #tpu.memory_space<vmem>>, vector<32x192xbf16>
    %c0_1 = arith.constant 0 : index
    %c0_2 = arith.constant 0 : index
    %1 = vector.load %arg2[%c0_1, %c0_2] : memref<576x256xbf16, #tpu.memory_space<vmem>>, vector<192x256xbf16>
    %cst = arith.constant dense<0.000000e+00> : vector<32x256xf32>
    %2 = tpu.matmul %0, %1, %cst {dimension_numbers = #tpu.dot_dimension_numbers<[1], [0], [0], [1], [0, 0, 1, 1], [], []>} : vector<32x192xbf16>, vector<192x256xbf16>, vector<32x256xf32> -> vector<32x256xf32>
    %c0_3 = arith.constant 0 : index
    %c0_4 = arith.constant 0 : index
    %3 = vector.load %arg4[%c0_3, %c0_4] : memref<8x256xf32, #tpu.memory_space<vmem>>, vector<1x256xf32>
    %4 = vector.broadcast %3 : vector<1x256xf32> to vector<32x256xf32>
    %5 = arith.addf %2, %4 : vector<32x256xf32>
    %cst_5 = arith.constant 0.000000e+00 : f32
    %6 = vector.broadcast %cst_5 : f32 to vector<32x256xf32>
    %7 = arith.maximumf %5, %6 : vector<32x256xf32>
    %8 = vector.extract_strided_slice %7 {offsets = [0, 0], sizes = [32, 128], strides = [1, 1]} : vector<32x256xf32> to vector<32x128xf32>
    %9 = vector.extract_strided_slice %7 {offsets = [0, 128], sizes = [32, 128], strides = [1, 1]} : vector<32x256xf32> to vector<32x128xf32>
    %10 = arith.maximumf %8, %9 : vector<32x128xf32>
    %c0_6 = arith.constant 0 : index
    %c0_7 = arith.constant 0 : index
    %11 = vector.load %arg6[%c0_6, %c0_7] : memref<32x128xf32, #tpu.memory_space<vmem>>, vector<32x128xf32>
    tpu.vector_store %arg6[%c0_6, %c0_7], %10 {strides = array<i32>} : memref<32x128xf32, #tpu.memory_space<vmem>>, vector<32x128xf32>,
    %c0_8 = arith.constant 0 : index
    %c0_9 = arith.constant 0 : index
    %12 = tpu.strided_load %arg6[%c0_8, %c0_9] {strides = array<i32: 2, 1>} : memref<32x128xf32, #tpu.memory_space<vmem>>, vector<16x128xf32>
    %c1 = arith.constant 1 : index
    %c0_10 = arith.constant 0 : index
    %13 = tpu.strided_load %arg6[%c1, %c0_10] {strides = array<i32: 2, 1>} : memref<32x128xf32, #tpu.memory_space<vmem>>, vector<16x128xf32>
    %14 = arith.maximumf %12, %13 : vector<16x128xf32>
    %15 = vector.shape_cast %14 : vector<16x128xf32> to vector<2x8x128xf32>
    %cst_11 = arith.constant 0.000000e+00 : f32
    %16 = vector.broadcast %cst_11 : f32 to vector<2x1x128xf32>
    %17 = tpu.concatenate %16, %15, %16 in 1 : vector<2x1x128xf32>, vector<2x8x128xf32>, vector<2x1x128xf32> -> vector<2x10x128xf32>
    %18 = vector.extract_strided_slice %17 {offsets = [0, 0, 0], sizes = [2, 8, 128], strides = [1, 1, 1]} : vector<2x10x128xf32> to vector<2x8x128xf32>
    %19 = vector.extract_strided_slice %17 {offsets = [0, 1, 0], sizes = [2, 8, 128], strides = [1, 1, 1]} : vector<2x10x128xf32> to vector<2x8x128xf32>
    %20 = vector.extract_strided_slice %17 {offsets = [0, 2, 0], sizes = [2, 8, 128], strides = [1, 1, 1]} : vector<2x10x128xf32> to vector<2x8x128xf32>
    %21 = tpu.concatenate %18, %19, %20 in 2 : vector<2x8x128xf32>, vector<2x8x128xf32>, vector<2x8x128xf32> -> vector<2x8x384xf32>
    %22 = vector.shape_cast %21 : vector<2x8x384xf32> to vector<16x384xf32>
    %23 = arith.truncf %22 : vector<16x384xf32> to vector<16x384xbf16>
    %c192 = arith.constant 192 : index
    %c0_12 = arith.constant 0 : index
    %24 = vector.load %arg2[%c192, %c0_12] : memref<576x256xbf16, #tpu.memory_space<vmem>>, vector<384x256xbf16>
    %cst_13 = arith.constant dense<0.000000e+00> : vector<16x256xf32>
    %25 = tpu.matmul %23, %24, %cst_13 {dimension_numbers = #tpu.dot_dimension_numbers<[1], [0], [0], [1], [0, 0, 1, 1], [], []>} : vector<16x384xbf16>, vector<384x256xbf16>, vector<16x256xf32> -> vector<16x256xf32>
    %c1_14 = arith.constant 1 : index
    %c0_15 = arith.constant 0 : index
    %26 = vector.load %arg4[%c1_14, %c0_15] : memref<8x256xf32, #tpu.memory_space<vmem>>, vector<1x256xf32>
    %27 = vector.broadcast %26 : vector<1x256xf32> to vector<16x256xf32>
    %28 = arith.addf %25, %27 : vector<16x256xf32>
    %cst_16 = arith.constant 0.000000e+00 : f32
    %29 = vector.broadcast %cst_16 : f32 to vector<16x256xf32>
    %30 = arith.maximumf %28, %29 : vector<16x256xf32>
    %31 = vector.extract_strided_slice %30 {offsets = [0, 0], sizes = [16, 128], strides = [1, 1]} : vector<16x256xf32> to vector<16x128xf32>
    %32 = vector.extract_strided_slice %30 {offsets = [0, 128], sizes = [16, 128], strides = [1, 1]} : vector<16x256xf32> to vector<16x128xf32>
    %33 = arith.maximumf %31, %32 : vector<16x128xf32>
    %c0_17 = arith.constant 0 : index
    %c0_18 = arith.constant 0 : index
    %34 = vector.load %arg6[%c0_17, %c0_18] : memref<32x128xf32, #tpu.memory_space<vmem>>, vector<16x128xf32>
    tpu.vector_store %arg6[%c0_17, %c0_18], %33 {strides = array<i32>} : memref<32x128xf32, #tpu.memory_space<vmem>>, vector<16x128xf32>,
    %c0_19 = arith.constant 0 : index
    %c0_20 = arith.constant 0 : index
    %35 = tpu.strided_load %arg6[%c0_19, %c0_20] {strides = array<i32: 8, 1>} : memref<32x128xf32, #tpu.memory_space<vmem>>, vector<2x128xf32>
    %c1_21 = arith.constant 1 : index
    %c0_22 = arith.constant 0 : index
    %36 = tpu.strided_load %arg6[%c1_21, %c0_22] {strides = array<i32: 8, 1>} : memref<32x128xf32, #tpu.memory_space<vmem>>, vector<2x128xf32>
    %37 = arith.maximumf %35, %36 : vector<2x128xf32>
    %c2 = arith.constant 2 : index
    %c0_23 = arith.constant 0 : index
    %38 = tpu.strided_load %arg6[%c2, %c0_23] {strides = array<i32: 8, 1>} : memref<32x128xf32, #tpu.memory_space<vmem>>, vector<2x128xf32>
    %c3 = arith.constant 3 : index
    %c0_24 = arith.constant 0 : index
    %39 = tpu.strided_load %arg6[%c3, %c0_24] {strides = array<i32: 8, 1>} : memref<32x128xf32, #tpu.memory_space<vmem>>, vector<2x128xf32>
    %40 = arith.maximumf %38, %39 : vector<2x128xf32>
    %c4 = arith.constant 4 : index
    %c0_25 = arith.constant 0 : index
    %41 = tpu.strided_load %arg6[%c4, %c0_25] {strides = array<i32: 8, 1>} : memref<32x128xf32, #tpu.memory_space<vmem>>, vector<2x128xf32>
    %c5 = arith.constant 5 : index
    %c0_26 = arith.constant 0 : index
    %42 = tpu.strided_load %arg6[%c5, %c0_26] {strides = array<i32: 8, 1>} : memref<32x128xf32, #tpu.memory_space<vmem>>, vector<2x128xf32>
    %43 = arith.maximumf %41, %42 : vector<2x128xf32>
    %c6 = arith.constant 6 : index
    %c0_27 = arith.constant 0 : index
    %44 = tpu.strided_load %arg6[%c6, %c0_27] {strides = array<i32: 8, 1>} : memref<32x128xf32, #tpu.memory_space<vmem>>, vector<2x128xf32>
    %c7 = arith.constant 7 : index
    %c0_28 = arith.constant 0 : index
    %45 = tpu.strided_load %arg6[%c7, %c0_28] {strides = array<i32: 8, 1>} : memref<32x128xf32, #tpu.memory_space<vmem>>, vector<2x128xf32>
    %46 = arith.maximumf %44, %45 : vector<2x128xf32>
    %47 = tpu.concatenate %37, %40, %43, %46 in 1 : vector<2x128xf32>, vector<2x128xf32>, vector<2x128xf32>, vector<2x128xf32> -> vector<2x512xf32>
    %48 = arith.truncf %47 : vector<2x512xf32> to vector<2x512xbf16>
    %c0_29 = arith.constant 0 : index
    %c0_30 = arith.constant 0 : index
    %49 = vector.load %arg3[%c0_29, %c0_30] : memref<512x128xbf16, #tpu.memory_space<vmem>>, vector<512x128xbf16>
    %cst_31 = arith.constant dense<0.000000e+00> : vector<2x128xf32>
    %50 = tpu.matmul %48, %49, %cst_31 {dimension_numbers = #tpu.dot_dimension_numbers<[1], [0], [0], [1], [0, 0, 1, 1], [], []>} : vector<2x512xbf16>, vector<512x128xbf16>, vector<2x128xf32> -> vector<2x128xf32>
    %c2_32 = arith.constant 2 : index
    %c0_33 = arith.constant 0 : index
    %51 = vector.load %arg4[%c2_32, %c0_33] : memref<8x256xf32, #tpu.memory_space<vmem>>, vector<1x128xf32>
    %52 = vector.broadcast %51 : vector<1x128xf32> to vector<2x128xf32>
    %53 = arith.addf %50, %52 : vector<2x128xf32>
    %cst_34 = arith.constant 0.000000e+00 : f32
    %54 = vector.broadcast %cst_34 : f32 to vector<2x128xf32>
    %55 = arith.maximumf %53, %54 : vector<2x128xf32>
    %c3_35 = arith.constant 3 : index
    %c0_36 = arith.constant 0 : index
    %56 = vector.load %arg4[%c3_35, %c0_36] : memref<8x256xf32, #tpu.memory_space<vmem>>, vector<1x128xf32>
    %57 = vector.broadcast %56 : vector<1x128xf32> to vector<2x128xf32>
    %58 = arith.mulf %55, %57 : vector<2x128xf32>
    %cst_37 = arith.constant dense<0.000000e+00> : vector<2xf32>
    %59 = vector.multi_reduction <add>, %58, %cst_37 [1] : vector<2x128xf32> to vector<2xf32>
    %60 = vector.shape_cast %59 : vector<2xf32> to vector<2x1xf32>
    %c4_38 = arith.constant 4 : index
    %c0_39 = arith.constant 0 : index
    %61 = vector.load %arg4[%c4_38, %c0_39] : memref<8x256xf32, #tpu.memory_space<vmem>>, vector<1x1xf32>
    %62 = vector.broadcast %61 : vector<1x1xf32> to vector<2x1xf32>
    %63 = arith.addf %60, %62 : vector<2x1xf32>
    %c0_40 = arith.constant 0 : index
    %c0_41 = arith.constant 0 : index
    %64 = vector.load %arg5[%c0_40, %c0_41] : memref<2x1xf32, #tpu.memory_space<vmem>>, vector<2x1xf32>
    tpu.vector_store %arg5[%c0_40, %c0_41], %63 {strides = array<i32>} : memref<2x1xf32, #tpu.memory_space<vmem>>, vector<2x1xf32>,
    return
  }
  func.func @transform_0(%arg0: i32) -> (i32, i32) {
    %c0_i32 = arith.constant 0 : i32
    %c0_i32_0 = arith.constant 0 : i32
    return %arg0, %c0_i32 : i32, i32
  }
  func.func @transform_1(%arg0: i32) -> (i32, i32) {
    %c0_i32 = arith.constant 0 : i32
    %c0_i32_0 = arith.constant 0 : i32
    %c0_i32_1 = arith.constant 0 : i32
    return %c0_i32, %c0_i32_0 : i32, i32
  }
  func.func @transform_2(%arg0: i32) -> (i32, i32) {
    %c0_i32 = arith.constant 0 : i32
    %c0_i32_0 = arith.constant 0 : i32
    %c0_i32_1 = arith.constant 0 : i32
    return %c0_i32, %c0_i32_0 : i32, i32
  }
  func.func @transform_3(%arg0: i32) -> (i32, i32) {
    %c0_i32 = arith.constant 0 : i32
    %c0_i32_0 = arith.constant 0 : i32
    %c0_i32_1 = arith.constant 0 : i32
    return %c0_i32, %c0_i32_0 : i32, i32
  }
  func.func @transform_4(%arg0: i32) -> (i32, i32) {
    %c0_i32 = arith.constant 0 : i32
    %c0_i32_0 = arith.constant 0 : i32
    return %arg0, %c0_i32 : i32, i32
  }
}

</mosaic_0001>

<llo_original>
// kernel: pm_single_net_forward.1
$region0: #{pm_single_net_forward.1}
  #allocation0 [shape = 'u32[]', space=smem, size = 0x4, offset = 0x4, fixed_abs, tag = 'smem constant byte address 0x4 - core index']
  #allocation1 [shape = 'u32[144,128]{1,0:T(1,128)}', space=vmem, size = 0x12000, scoped, tag = 'internal scratch']
  #allocation2 [shape = 'f32[32,128]{1,0:T(8,128)}', space=vmem, size = 0x4000, scoped, tag = 'scratch operand']
  %s0 = inlined_call_operand.vmem [shape: bf16[32,192], index: 0, kind: input, shape index: {}]
  %s1 = inlined_call_operand.vmem [shape: bf16[576,256], index: 1, kind: input, shape index: {}]
  %s2 = inlined_call_operand.vmem [shape: bf16[512,128], index: 2, kind: input, shape index: {}]
  %s3 = inlined_call_operand.vmem [shape: f32[8,256], index: 3, kind: input, shape index: {}]
  %s4 = inlined_call_operand.vmem [shape: f32[2,1], index: 4, kind: output, shape index: {}]
  %s5 = sld [smem:[#allocation0]]
  $region26: #{pm_single_net_forward.1} parent=0
    _
  %s7 = ssub.s32 1, %s5
  %s8 = scalar_select 0, %s7, %s5
  // Predicated region
  $region2: #{pm_single_net_forward.1} parent=0 // pred_check
    _
  $region3: #{pm_single_net_forward.1} parent=0 // pred_check_branch
    %10 = sbr.rel (0) target = $region5
  $region4: #{pm_single_net_forward.1} parent=0 // pred_region
    _
  $region5: #{pm_single_net_forward.1} parent=0 // pred_fallthru
    _
  // Predicated region
  $region6: #{pm_single_net_forward.1} parent=0 // pred_check
    _
  $region7: #{pm_single_net_forward.1} parent=0 // pred_check_branch
    %12 = sbr.rel (0) target = $region9
  $region8: #{pm_single_net_forward.1} parent=0 // pred_region
    _
  $region9: #{pm_single_net_forward.1} parent=0 // pred_fallthru
    _
  // Predicated region
  $region10: #{pm_single_net_forward.1} parent=0 // pred_check
    _
  $region11: #{pm_single_net_forward.1} parent=0 // pred_check_branch
    %14 = sbr.rel (0) target = $region13
  $region12: #{pm_single_net_forward.1} parent=0 // pred_region
    _
  $region13: #{pm_single_net_forward.1} parent=0 // pred_fallthru
    _
  // Predicated region
  $region14: #{pm_single_net_forward.1} parent=0 // pred_check
    _
  $region15: #{pm_single_net_forward.1} parent=0 // pred_check_branch
    %16 = sbr.rel (0) target = $region17
  $region16: #{pm_single_net_forward.1} parent=0 // pred_region
    _
  $region17: #{pm_single_net_forward.1} parent=0 // pred_fallthru
    _
  %v18 = vld [vmem:[%s0] sm:$0xff]
  %v19 = vld [vmem:[%s0 + $0x8] sm:$0xff]
  %v20 = vld [vmem:[%s0 + $0x10] sm:$0xff]
  %v21 = vld [vmem:[%s0 + $0x18] sm:$0xff]
  %v22 = vld [vmem:[%s1] sm:$0xff]
  %v23 = vld [vmem:[%s1 + $0x8] sm:$0xff]
  %v24 = vld [vmem:[%s1 + $0x10] sm:$0xff]
  %v25 = vld [vmem:[%s1 + $0x18] sm:$0xff]
  %v26 = vld [vmem:[%s1 + $0x20] sm:$0xff]
  %v27 = vld [vmem:[%s1 + $0x28] sm:$0xff]
  %v28 = vld [vmem:[%s1 + $0x30] sm:$0xff]
  %v29 = vld [vmem:[%s1 + $0x38] sm:$0xff]
  %v30 = vld [vmem:[%s1 + $0x40] sm:$0xff]
  %v31 = vld [vmem:[%s1 + $0x48] sm:$0xff]
  %v32 = vld [vmem:[%s1 + $0x50] sm:$0xff]
  %v33 = vld [vmem:[%s1 + $0x58] sm:$0xff]
  %v34 = vld [vmem:[%s1 + $0x60] sm:$0xff]
  %v35 = vld [vmem:[%s1 + $0x68] sm:$0xff]
  %v36 = vld [vmem:[%s1 + $0x70] sm:$0xff]
  %v37 = vld [vmem:[%s1 + $0x78] sm:$0xff]
  %v38 = vld [vmem:[%s1 + $0x80] sm:$0xff]
  %v39 = vld [vmem:[%s1 + $0x88] sm:$0xff]
  %v40 = vld [vmem:[%s1 + $0x90] sm:$0xff]
  %v41 = vld [vmem:[%s1 + $0x98] sm:$0xff]
  %v42 = vld [vmem:[%s1 + $0xa0] sm:$0xff]
  %v43 = vld [vmem:[%s1 + $0xa8] sm:$0xff]
  %v44 = vld [vmem:[%s1 + $0xb0] sm:$0xff]
  %v45 = vld [vmem:[%s1 + $0xb8] sm:$0xff]
  %v46 = vld [vmem:[%s3] ss:$8 sm:$0x3]
  %v48 = vlaneseq
  %v49 = vshrl.u32 %v48, 7
  %v50 = vsub.s32 0, %v49
  %v51 = vrot.slane %v46, %v50
  %v52 = vlaneseq
  %v53 = vshrl.u32 %v52, 7
  %v54 = vsub.s32 1, %v53
  %v55 = vrot.slane %v46, %v54
  %v62 = vunpack.c.l.b16 %v18
  %v63 = vunpack.c.h.b16 %v18
  %v64 = vunpack.c.l.b16 %v19
  %v65 = vunpack.c.h.b16 %v19
  %v66 = vunpack.c.l.b16 %v20
  %v67 = vunpack.c.h.b16 %v20
  %v68 = vunpack.c.l.b16 %v21
  %v69 = vunpack.c.h.b16 %v21
  %v70 = vpack.c.b16 %v64, %v62
  %v71 = vpack.c.b16 %v65, %v63
  %v72 = vpack.c.b16 %v68, %v66
  %v73 = vpack.c.b16 %v69, %v67
  %v100 = vunpack.c.l.b16 %v22
  %v101 = vunpack.c.h.b16 %v22
  %v102 = vunpack.c.l.b16 %v23
  %v103 = vunpack.c.h.b16 %v23
  %v104 = vunpack.c.l.b16 %v24
  %v105 = vunpack.c.h.b16 %v24
  %v106 = vunpack.c.l.b16 %v25
  %v107 = vunpack.c.h.b16 %v25
  %v108 = vunpack.c.l.b16 %v26
  %v109 = vunpack.c.h.b16 %v26
  %v110 = vunpack.c.l.b16 %v27
  %v111 = vunpack.c.h.b16 %v27
  %v112 = vunpack.c.l.b16 %v28
  %v113 = vunpack.c.h.b16 %v28
  %v114 = vunpack.c.l.b16 %v29
  %v115 = vunpack.c.h.b16 %v29
  %v116 = vunpack.c.l.b16 %v30
  %v117 = vunpack.c.h.b16 %v30
  %v118 = vunpack.c.l.b16 %v31
  %v119 = vunpack.c.h.b16 %v31
  %v120 = vunpack.c.l.b16 %v32
  %v121 = vunpack.c.h.b16 %v32
  %v122 = vunpack.c.l.b16 %v33
  %v123 = vunpack.c.h.b16 %v33
  %v124 = vunpack.c.l.b16 %v34
  %v125 = vunpack.c.h.b16 %v34
  %v126 = vunpack.c.l.b16 %v35
  %v127 = vunpack.c.h.b16 %v35
  %v128 = vunpack.c.l.b16 %v36
  %v129 = vunpack.c.h.b16 %v36
  %v130 = vunpack.c.l.b16 %v37
  %v131 = vunpack.c.h.b16 %v37
  %v132 = vunpack.c.l.b16 %v38
  %v133 = vunpack.c.h.b16 %v38
  %v134 = vunpack.c.l.b16 %v39
  %v135 = vunpack.c.h.b16 %v39
  %v136 = vunpack.c.l.b16 %v40
  %v137 = vunpack.c.h.b16 %v40
  %v138 = vunpack.c.l.b16 %v41
  %v139 = vunpack.c.h.b16 %v41
  %v140 = vunpack.c.l.b16 %v42
  %v141 = vunpack.c.h.b16 %v42
  %v142 = vunpack.c.l.b16 %v43
  %v143 = vunpack.c.h.b16 %v43
  %v144 = vunpack.c.l.b16 %v44
  %v145 = vunpack.c.h.b16 %v44
  %v146 = vunpack.c.l.b16 %v45
  %v147 = vunpack.c.h.b16 %v45
  %v148 = vpack.c.b16 %v102, %v100
  %v149 = vpack.c.b16 %v103, %v101
  %v150 = vpack.c.b16 %v106, %v104
  %v151 = vpack.c.b16 %v107, %v105
  %v152 = vpack.c.b16 %v110, %v108
  %v153 = vpack.c.b16 %v111, %v109
  %v154 = vpack.c.b16 %v114, %v112
  %v155 = vpack.c.b16 %v115, %v113
  %v156 = vpack.c.b16 %v118, %v116
  %v157 = vpack.c.b16 %v119, %v117
  %v158 = vpack.c.b16 %v122, %v120
  %v159 = vpack.c.b16 %v123, %v121
  %v160 = vpack.c.b16 %v126, %v124
  %v161 = vpack.c.b16 %v127, %v125
  %v162 = vpack.c.b16 %v130, %v128
  %v163 = vpack.c.b16 %v131, %v129
  %v164 = vpack.c.b16 %v134, %v132
  %v165 = vpack.c.b16 %v135, %v133
  %v166 = vpack.c.b16 %v138, %v136
  %v167 = vpack.c.b16 %v139, %v137
  %v168 = vpack.c.b16 %v142, %v140
  %v169 = vpack.c.b16 %v143, %v141
  %v170 = vpack.c.b16 %v146, %v144
  %v171 = vpack.c.b16 %v147, %v145
  %vm196 = vcmask 523264
  %v198 = vsel %vm196, %v71, 0
  %v201 = vsel %vm196, %v73, 0
  %203 = vmatprep.subr.bf16.mxu0 %v149
  %204 = vmatpush1.bf16.msra.mxu0 %v148
  %205 = vmatprep.subr.bf16.mxu0 %v151
  %206 = vmatpush1.bf16.msra.mxu0 %v150
  %207 = vmatprep.subr.bf16.mxu0 %v153
  %208 = vmatpush1.bf16.msra.mxu0 %v152
  %209 = vmatprep.subr.bf16.mxu0 %v155
  %210 = vmatpush1.bf16.msra.mxu0 %v154
  %211 = vmatprep.subr.bf16.mxu0 %v157
  %212 = vmatpush1.bf16.msra.mxu0 %v156
  %213 = vmatprep.subr.bf16.mxu0 %v159
  %214 = vmatpush1.bf16.msra.mxu0 %v158
  %215 = vmatprep.subr.bf16.mxu0 %v161
  %216 = vmatpush1.bf16.msra.mxu0 %v160
  %217 = vmatprep.subr.bf16.mxu0 %v163
  %218 = vmatpush1.bf16.msra.mxu0 %v162
  %219 = vmatprep.subr.bf16.mxu0 %v165
  %220 = vmatpush1.bf16.msra.mxu0 %v164
  %221 = vmatprep.subr.bf16.mxu0 %v167
  %222 = vmatpush1.bf16.msra.mxu0 %v166
  %223 = vmatprep.subr.bf16.mxu0 %v169
  %224 = vmatpush1.bf16.msra.mxu0 %v168
  %225 = vmatprep.subr.bf16.mxu0 %v171
  %226 = vmatpush1.bf16.msra.mxu0 %v170
  %227 = vmatprep.subr.bf16.mxu0 0
  %228 = vmatpush1.bf16.msra.mxu0 0
  %229 = vmatprep.subr.bf16.mxu0 0
  %230 = vmatpush1.bf16.msra.mxu0 0
  %231 = vmatprep.subr.bf16.mxu0 0
  %232 = vmatpush1.bf16.msra.mxu0 0
  %233 = vmatprep.subr.bf16.mxu0 0
  %234 = vmatpush1.bf16.msra.mxu0 0
  %235 = vmatprep.mubr.bf16.mxu0 %v198
  %236 = vmatmul.mubr.bf16.gmra.mrb[0].mxu0 %v70
  %v237 = vpop.f32.mrb[0].mxu0
  %v238 = vadd.f32 %v51, %v237
  %v239 = vpop.f32.mrb[0].mxu0
  %v240 = vadd.f32 %v55, %v239
  %v241 = vpop.f32.mrb[0].mxu0
  %v242 = vadd.f32 %v51, %v241
  %v243 = vpop.f32.mrb[0].mxu0
  %v244 = vadd.f32 %v55, %v243
  %245 = vmatprep.mubr.bf16.mxu0 %v201
  %246 = vmatmul.mubr.bf16.gmra.mrb[0].mxu0 %v72
  %v247 = vpop.f32.mrb[0].mxu0
  %v248 = vadd.f32 %v51, %v247
  %v249 = vpop.f32.mrb[0].mxu0
  %v250 = vadd.f32 %v55, %v249
  %v251 = vpop.f32.mrb[0].mxu0
  %v252 = vadd.f32 %v51, %v251
  %v253 = vpop.f32.mrb[0].mxu0
  %v254 = vadd.f32 %v55, %v253
  %255 = vdwg.mxu0
  %v256 = vmax.f32 %v238, 0.0
  %v257 = vmax.f32 %v240, 0.0
  %v258 = vmax.f32 %v242, 0.0
  %v259 = vmax.f32 %v244, 0.0
  %v260 = vmax.f32 %v248, 0.0
  %v261 = vmax.f32 %v250, 0.0
  %v262 = vmax.f32 %v252, 0.0
  %v263 = vmax.f32 %v254, 0.0
  %v264 = vmax.f32 %v256, %v257
  %v265 = vmax.f32 %v258, %v259
  %v266 = vmax.f32 %v260, %v261
  %v267 = vmax.f32 %v262, %v263
  %268 = vst [vmem:[#allocation2] sm:$0xff] %v264
  %269 = vst [vmem:[#allocation2 + $0x8] sm:$0xff] %v265
  %270 = vst [vmem:[#allocation2 + $0x10] sm:$0xff] %v266
  %271 = vst [vmem:[#allocation2 + $0x18] sm:$0xff] %v267
  %v272 = vld [vmem:[#allocation2] ss:$2 sm:$0xff]
  %s273 = scalar_lea.vmem [#allocation2], 16
  %v274 = vld [vmem:[%s273] ss:$2 sm:$0xff]
  %s275 = scalar_lea.vmem [#allocation2], 1
  %v276 = vld [vmem:[%s275] ss:$2 sm:$0xff]
  %s277 = scalar_lea.vmem [#allocation2], 17
  %v278 = vld [vmem:[%s277] ss:$2 sm:$0xff]
  %v279 = vmax.f32 %v272, %v276
  %v280 = vmax.f32 %v274, %v278
  %v283 = vrot.slane %v279, 7
  %v284 = vrot.slane %v280, 7
  %vm287 = vcmask 1040384
  %v288 = vsel %vm287, 0.0, %v283
  %v289 = vsel %vm287, 0.0, %v284
  %v290 = vsel %vm287, %v283, 0.0
  %v291 = vsel %vm287, %v284, 0.0
  %vm296 = vcmask 1046528
  %v297 = vrot.slane %v288, 1
  %v298 = vrot.slane %v290, 1
  %v299 = vsel %vm296, %v297, %v298
  %v300 = vrot.slane %v289, 1
  %v301 = vrot.slane %v291, 1
  %v302 = vsel %vm296, %v300, %v301
  %vm305 = vcmask 1045504
  %v306 = vrot.slane %v288, 2
  %v307 = vrot.slane %v290, 2
  %v308 = vsel %vm305, %v306, %v307
  %v309 = vrot.slane %v289, 2
  %v310 = vrot.slane %v291, 2
  %v311 = vsel %vm305, %v309, %v310
  %v314 = vpack.c.bf16 %v289, %v288
  %v315 = vpack.c.bf16 %v302, %v299
  %v316 = vpack.c.bf16 %v311, %v308
  %v317 = vld [vmem:[%s1 + $0xc0] sm:$0xff]
  %v318 = vld [vmem:[%s1 + $0xc8] sm:$0xff]
  %v319 = vld [vmem:[%s1 + $0xd0] sm:$0xff]
  %v320 = vld [vmem:[%s1 + $0xd8] sm:$0xff]
  %v321 = vld [vmem:[%s1 + $0xe0] sm:$0xff]
  %v322 = vld [vmem:[%s1 + $0xe8] sm:$0xff]
  %v323 = vld [vmem:[%s1 + $0xf0] sm:$0xff]
  %v324 = vld [vmem:[%s1 + $0xf8] sm:$0xff]
  %v325 = vld [vmem:[%s1 + $0x100] sm:$0xff]
  %v326 = vld [vmem:[%s1 + $0x108] sm:$0xff]
  %v327 = vld [vmem:[%s1 + $0x110] sm:$0xff]
  %v328 = vld [vmem:[%s1 + $0x118] sm:$0xff]
  %v329 = vld [vmem:[%s1 + $0x120] sm:$0xff]
  %v330 = vld [vmem:[%s1 + $0x128] sm:$0xff]
  %v331 = vld [vmem:[%s1 + $0x130] sm:$0xff]
  %v332 = vld [vmem:[%s1 + $0x138] sm:$0xff]
  %v333 = vld [vmem:[%s1 + $0x140] sm:$0xff]
  %v334 = vld [vmem:[%s1 + $0x148] sm:$0xff]
  %v335 = vld [vmem:[%s1 + $0x150] sm:$0xff]
  %v336 = vld [vmem:[%s1 + $0x158] sm:$0xff]
  %v337 = vld [vmem:[%s1 + $0x160] sm:$0xff]
  %v338 = vld [vmem:[%s1 + $0x168] sm:$0xff]
  %v339 = vld [vmem:[%s1 + $0x170] sm:$0xff]
  %v340 = vld [vmem:[%s1 + $0x178] sm:$0xff]
  %v341 = vld [vmem:[%s1 + $0x180] sm:$0xff]
  %v342 = vld [vmem:[%s1 + $0x188] sm:$0xff]
  %v343 = vld [vmem:[%s1 + $0x190] sm:$0xff]
  %v344 = vld [vmem:[%s1 + $0x198] sm:$0xff]
  %v345 = vld [vmem:[%s1 + $0x1a0] sm:$0xff]
  %v346 = vld [vmem:[%s1 + $0x1a8] sm:$0xff]
  %v347 = vld [vmem:[%s1 + $0x1b0] sm:$0xff]
  %v348 = vld [vmem:[%s1 + $0x1b8] sm:$0xff]
  %v349 = vld [vmem:[%s1 + $0x1c0] sm:$0xff]
  %v350 = vld [vmem:[%s1 + $0x1c8] sm:$0xff]
  %v351 = vld [vmem:[%s1 + $0x1d0] sm:$0xff]
  %v352 = vld [vmem:[%s1 + $0x1d8] sm:$0xff]
  %v353 = vld [vmem:[%s1 + $0x1e0] sm:$0xff]
  %v354 = vld [vmem:[%s1 + $0x1e8] sm:$0xff]
  %v355 = vld [vmem:[%s1 + $0x1f0] sm:$0xff]
  %v356 = vld [vmem:[%s1 + $0x1f8] sm:$0xff]
  %v357 = vld [vmem:[%s1 + $0x200] sm:$0xff]
  %v358 = vld [vmem:[%s1 + $0x208] sm:$0xff]
  %v359 = vld [vmem:[%s1 + $0x210] sm:$0xff]
  %v360 = vld [vmem:[%s1 + $0x218] sm:$0xff]
  %v361 = vld [vmem:[%s1 + $0x220] sm:$0xff]
  %v362 = vld [vmem:[%s1 + $0x228] sm:$0xff]
  %v363 = vld [vmem:[%s1 + $0x230] sm:$0xff]
  %v364 = vld [vmem:[%s1 + $0x238] sm:$0xff]
  %s365 = scalar_lea.vmem %s3, 1
  %v366 = vld [vmem:[%s365] ss:$8 sm:$0x3]
  %v368 = vlaneseq
  %v369 = vshrl.u32 %v368, 7
  %v370 = vsub.s32 0, %v369
  %v371 = vrot.slane %v366, %v370
  %v372 = vlaneseq
  %v373 = vshrl.u32 %v372, 7
  %v374 = vsub.s32 1, %v373
  %v375 = vrot.slane %v366, %v374
  %v426 = vunpack.c.l.b16 %v317
  %v427 = vunpack.c.h.b16 %v317
  %v428 = vunpack.c.l.b16 %v318
  %v429 = vunpack.c.h.b16 %v318
  %v430 = vunpack.c.l.b16 %v319
  %v431 = vunpack.c.h.b16 %v319
  %v432 = vunpack.c.l.b16 %v320
  %v433 = vunpack.c.h.b16 %v320
  %v434 = vunpack.c.l.b16 %v321
  %v435 = vunpack.c.h.b16 %v321
  %v436 = vunpack.c.l.b16 %v322
  %v437 = vunpack.c.h.b16 %v322
  %v438 = vunpack.c.l.b16 %v323
  %v439 = vunpack.c.h.b16 %v323
  %v440 = vunpack.c.l.b16 %v324
  %v441 = vunpack.c.h.b16 %v324
  %v442 = vunpack.c.l.b16 %v325
  %v443 = vunpack.c.h.b16 %v325
  %v444 = vunpack.c.l.b16 %v326
  %v445 = vunpack.c.h.b16 %v326
  %v446 = vunpack.c.l.b16 %v327
  %v447 = vunpack.c.h.b16 %v327
  %v448 = vunpack.c.l.b16 %v328
  %v449 = vunpack.c.h.b16 %v328
  %v450 = vunpack.c.l.b16 %v329
  %v451 = vunpack.c.h.b16 %v329
  %v452 = vunpack.c.l.b16 %v330
  %v453 = vunpack.c.h.b16 %v330
  %v454 = vunpack.c.l.b16 %v331
  %v455 = vunpack.c.h.b16 %v331
  %v456 = vunpack.c.l.b16 %v332
  %v457 = vunpack.c.h.b16 %v332
  %v458 = vunpack.c.l.b16 %v333
  %v459 = vunpack.c.h.b16 %v333
  %v460 = vunpack.c.l.b16 %v334
  %v461 = vunpack.c.h.b16 %v334
  %v462 = vunpack.c.l.b16 %v335
  %v463 = vunpack.c.h.b16 %v335
  %v464 = vunpack.c.l.b16 %v336
  %v465 = vunpack.c.h.b16 %v336
  %v466 = vunpack.c.l.b16 %v337
  %v467 = vunpack.c.h.b16 %v337
  %v468 = vunpack.c.l.b16 %v338
  %v469 = vunpack.c.h.b16 %v338
  %v470 = vunpack.c.l.b16 %v339
  %v471 = vunpack.c.h.b16 %v339
  %v472 = vunpack.c.l.b16 %v340
  %v473 = vunpack.c.h.b16 %v340
  %v474 = vunpack.c.l.b16 %v341
  %v475 = vunpack.c.h.b16 %v341
  %v476 = vunpack.c.l.b16 %v342
  %v477 = vunpack.c.h.b16 %v342
  %v478 = vunpack.c.l.b16 %v343
  %v479 = vunpack.c.h.b16 %v343
  %v480 = vunpack.c.l.b16 %v344
  %v481 = vunpack.c.h.b16 %v344
  %v482 = vunpack.c.l.b16 %v345
  %v483 = vunpack.c.h.b16 %v345
  %v484 = vunpack.c.l.b16 %v346
  %v485 = vunpack.c.h.b16 %v346
  %v486 = vunpack.c.l.b16 %v347
  %v487 = vunpack.c.h.b16 %v347
  %v488 = vunpack.c.l.b16 %v348
  %v489 = vunpack.c.h.b16 %v348
  %v490 = vunpack.c.l.b16 %v349
  %v491 = vunpack.c.h.b16 %v349
  %v492 = vunpack.c.l.b16 %v350
  %v493 = vunpack.c.h.b16 %v350
  %v494 = vunpack.c.l.b16 %v351
  %v495 = vunpack.c.h.b16 %v351
  %v496 = vunpack.c.l.b16 %v352
  %v497 = vunpack.c.h.b16 %v352
  %v498 = vunpack.c.l.b16 %v353
  %v499 = vunpack.c.h.b16 %v353
  %v500 = vunpack.c.l.b16 %v354
  %v501 = vunpack.c.h.b16 %v354
  %v502 = vunpack.c.l.b16 %v355
  %v503 = vunpack.c.h.b16 %v355
  %v504 = vunpack.c.l.b16 %v356
  %v505 = vunpack.c.h.b16 %v356
  %v506 = vunpack.c.l.b16 %v357
  %v507 = vunpack.c.h.b16 %v357
  %v508 = vunpack.c.l.b16 %v358
  %v509 = vunpack.c.h.b16 %v358
  %v510 = vunpack.c.l.b16 %v359
  %v511 = vunpack.c.h.b16 %v359
  %v512 = vunpack.c.l.b16 %v360
  %v513 = vunpack.c.h.b16 %v360
  %v514 = vunpack.c.l.b16 %v361
  %v515 = vunpack.c.h.b16 %v361
  %v516 = vunpack.c.l.b16 %v362
  %v517 = vunpack.c.h.b16 %v362
  %v518 = vunpack.c.l.b16 %v363
  %v519 = vunpack.c.h.b16 %v363
  %v520 = vunpack.c.l.b16 %v364
  %v521 = vunpack.c.h.b16 %v364
  %v522 = vpack.c.b16 %v428, %v426
  %v523 = vpack.c.b16 %v429, %v427
  %v524 = vpack.c.b16 %v432, %v430
  %v525 = vpack.c.b16 %v433, %v431
  %v526 = vpack.c.b16 %v436, %v434
  %v527 = vpack.c.b16 %v437, %v435
  %v528 = vpack.c.b16 %v440, %v438
  %v529 = vpack.c.b16 %v441, %v439
  %v530 = vpack.c.b16 %v444, %v442
  %v531 = vpack.c.b16 %v445, %v443
  %v532 = vpack.c.b16 %v448, %v446
  %v533 = vpack.c.b16 %v449, %v447
  %v534 = vpack.c.b16 %v452, %v450
  %v535 = vpack.c.b16 %v453, %v451
  %v536 = vpack.c.b16 %v456, %v454
  %v537 = vpack.c.b16 %v457, %v455
  %v538 = vpack.c.b16 %v460, %v458
  %v539 = vpack.c.b16 %v461, %v459
  %v540 = vpack.c.b16 %v464, %v462
  %v541 = vpack.c.b16 %v465, %v463
  %v542 = vpack.c.b16 %v468, %v466
  %v543 = vpack.c.b16 %v469, %v467
  %v544 = vpack.c.b16 %v472, %v470
  %v545 = vpack.c.b16 %v473, %v471
  %v546 = vpack.c.b16 %v476, %v474
  %v547 = vpack.c.b16 %v477, %v475
  %v548 = vpack.c.b16 %v480, %v478
  %v549 = vpack.c.b16 %v481, %v479
  %v550 = vpack.c.b16 %v484, %v482
  %v551 = vpack.c.b16 %v485, %v483
  %v552 = vpack.c.b16 %v488, %v486
  %v553 = vpack.c.b16 %v489, %v487
  %v554 = vpack.c.b16 %v492, %v490
  %v555 = vpack.c.b16 %v493, %v491
  %v556 = vpack.c.b16 %v496, %v494
  %v557 = vpack.c.b16 %v497, %v495
  %v558 = vpack.c.b16 %v500, %v498
  %v559 = vpack.c.b16 %v501, %v499
  %v560 = vpack.c.b16 %v504, %v502
  %v561 = vpack.c.b16 %v505, %v503
  %v562 = vpack.c.b16 %v508, %v506
  %v563 = vpack.c.b16 %v509, %v507
  %v564 = vpack.c.b16 %v512, %v510
  %v565 = vpack.c.b16 %v513, %v511
  %v566 = vpack.c.b16 %v516, %v514
  %v567 = vpack.c.b16 %v517, %v515
  %v568 = vpack.c.b16 %v520, %v518
  %v569 = vpack.c.b16 %v521, %v519
  %618 = vmatprep.subr.bf16.mxu0 %v523
  %619 = vmatpush1.bf16.msra.mxu0 %v522
  %620 = vmatprep.subr.bf16.mxu0 %v525
  %621 = vmatpush1.bf16.msra.mxu0 %v524
  %622 = vmatprep.subr.bf16.mxu0 %v527
  %623 = vmatpush1.bf16.msra.mxu0 %v526
  %624 = vmatprep.subr.bf16.mxu0 %v529
  %625 = vmatpush1.bf16.msra.mxu0 %v528
  %626 = vmatprep.subr.bf16.mxu0 %v531
  %627 = vmatpush1.bf16.msra.mxu0 %v530
  %628 = vmatprep.subr.bf16.mxu0 %v533
  %629 = vmatpush1.bf16.msra.mxu0 %v532
  %630 = vmatprep.subr.bf16.mxu0 %v535
  %631 = vmatpush1.bf16.msra.mxu0 %v534
  %632 = vmatprep.subr.bf16.mxu0 %v537
  %633 = vmatpush1.bf16.msra.mxu0 %v536
  %634 = vmatprep.subr.bf16.mxu0 %v539
  %635 = vmatpush1.bf16.msra.mxu0 %v538
  %636 = vmatprep.subr.bf16.mxu0 %v541
  %637 = vmatpush1.bf16.msra.mxu0 %v540
  %638 = vmatprep.subr.bf16.mxu0 %v543
  %639 = vmatpush1.bf16.msra.mxu0 %v542
  %640 = vmatprep.subr.bf16.mxu0 %v545
  %641 = vmatpush1.bf16.msra.mxu0 %v544
  %642 = vmatprep.subr.bf16.mxu0 %v547
  %643 = vmatpush1.bf16.msra.mxu0 %v546
  %644 = vmatprep.subr.bf16.mxu0 %v549
  %645 = vmatpush1.bf16.msra.mxu0 %v548
  %646 = vmatprep.subr.bf16.mxu0 %v551
  %647 = vmatpush1.bf16.msra.mxu0 %v550
  %648 = vmatprep.subr.bf16.mxu0 %v553
  %649 = vmatpush1.bf16.msra.mxu0 %v552
  %650 = vmatprep.mubr.bf16.mxu0 %v315
  %651 = vmatmul.mubr.bf16.gmra.mrb[0].mxu0 %v314
  %v652 = vpop.f32.mrb[0].mxu0
  %v653 = vadd.f32 %v371, %v652
  %v654 = vpop.f32.mrb[0].mxu0
  %v655 = vadd.f32 %v375, %v654
  %v656 = vpop.f32.mrb[0].mxu0
  %v657 = vadd.f32 %v371, %v656
  %v658 = vpop.f32.mrb[0].mxu0
  %v659 = vadd.f32 %v375, %v658
  %660 = vdwg.mxu0
  %661 = vmatprep.subr.bf16.mxu0 %v555
  %662 = vmatpush1.bf16.msra.mxu0 %v554
  %663 = vmatprep.subr.bf16.mxu0 %v557
  %664 = vmatpush1.bf16.msra.mxu0 %v556
  %665 = vmatprep.subr.bf16.mxu0 %v559
  %666 = vmatpush1.bf16.msra.mxu0 %v558
  %667 = vmatprep.subr.bf16.mxu0 %v561
  %668 = vmatpush1.bf16.msra.mxu0 %v560
  %669 = vmatprep.subr.bf16.mxu0 %v563
  %670 = vmatpush1.bf16.msra.mxu0 %v562
  %671 = vmatprep.subr.bf16.mxu0 %v565
  %672 = vmatpush1.bf16.msra.mxu0 %v564
  %673 = vmatprep.subr.bf16.mxu0 %v567
  %674 = vmatpush1.bf16.msra.mxu0 %v566
  %675 = vmatprep.subr.bf16.mxu0 %v569
  %676 = vmatpush1.bf16.msra.mxu0 %v568
  %677 = vmatprep.subr.bf16.mxu0 0
  %678 = vmatpush1.bf16.msra.mxu0 0
  %679 = vmatprep.subr.bf16.mxu0 0
  %680 = vmatpush1.bf16.msra.mxu0 0
  %681 = vmatprep.subr.bf16.mxu0 0
  %682 = vmatpush1.bf16.msra.mxu0 0
  %683 = vmatprep.subr.bf16.mxu0 0
  %684 = vmatpush1.bf16.msra.mxu0 0
  %685 = vmatprep.subr.bf16.mxu0 0
  %686 = vmatpush1.bf16.msra.mxu0 0
  %687 = vmatprep.subr.bf16.mxu0 0
  %688 = vmatpush1.bf16.msra.mxu0 0
  %689 = vmatprep.subr.bf16.mxu0 0
  %690 = vmatpush1.bf16.msra.mxu0 0
  %691 = vmatprep.subr.bf16.mxu0 0
  %692 = vmatpush1.bf16.msra.mxu0 0
  %693 = vmatprep.mubr.bf16.mxu0 0
  %694 = vmatmul.mubr.bf16.gmra.mrb[0].mxu0 %v316
  %v695 = vpop.f32.mrb[0].mxu0
  %v696 = vadd.f32 %v653, %v695
  %v697 = vpop.f32.mrb[0].mxu0
  %v698 = vadd.f32 %v655, %v697
  %v699 = vpop.f32.mrb[0].mxu0
  %v700 = vadd.f32 %v657, %v699
  %v701 = vpop.f32.mrb[0].mxu0
  %v702 = vadd.f32 %v659, %v701
  %703 = vdwg.mxu0
  %v704 = vmax.f32 %v696, 0.0
  %v705 = vmax.f32 %v698, 0.0
  %v706 = vmax.f32 %v700, 0.0
  %v707 = vmax.f32 %v702, 0.0
  %v708 = vmax.f32 %v704, %v705
  %v709 = vmax.f32 %v706, %v707
  %710 = vst [vmem:[#allocation2] sm:$0xff] %v708
  %711 = vst [vmem:[#allocation2 + $0x8] sm:$0xff] %v709
  %v712 = vld [vmem:[#allocation2] ss:$8 sm:$0x3]
  %v713 = vld [vmem:[%s275] ss:$8 sm:$0x3]
  %v714 = vmax.f32 %v712, %v713
  %s715 = scalar_lea.vmem [#allocation2], 2
  %v716 = vld [vmem:[%s715] ss:$8 sm:$0x3]
  %s717 = scalar_lea.vmem [#allocation2], 3
  %v718 = vld [vmem:[%s717] ss:$8 sm:$0x3]
  %v719 = vmax.f32 %v716, %v718
  %s720 = scalar_lea.vmem [#allocation2], 4
  %v721 = vld [vmem:[%s720] ss:$8 sm:$0x3]
  %s722 = scalar_lea.vmem [#allocation2], 5
  %v723 = vld [vmem:[%s722] ss:$8 sm:$0x3]
  %v724 = vmax.f32 %v721, %v723
  %s725 = scalar_lea.vmem [#allocation2], 6
  %v726 = vld [vmem:[%s725] ss:$8 sm:$0x3]
  %s727 = scalar_lea.vmem [#allocation2], 7
  %v728 = vld [vmem:[%s727] ss:$8 sm:$0x3]
  %v729 = vmax.f32 %v726, %v728
  %v730 = vpack.c.bf16 %v714, %v714
  %v731 = vpack.c.bf16 %v719, %v719
  %v732 = vpack.c.bf16 %v724, %v724
  %v733 = vpack.c.bf16 %v729, %v729
  %v734 = vld [vmem:[%s2] sm:$0xf]
  %v735 = vld [vmem:[%s2 + $0x4] sm:$0xf]
  %v736 = vld [vmem:[%s2 + $0x8] sm:$0xf]
  %v737 = vld [vmem:[%s2 + $0xc] sm:$0xf]
  %v738 = vld [vmem:[%s2 + $0x10] sm:$0xf]
  %v739 = vld [vmem:[%s2 + $0x14] sm:$0xf]
  %v740 = vld [vmem:[%s2 + $0x18] sm:$0xf]
  %v741 = vld [vmem:[%s2 + $0x1c] sm:$0xf]
  %v742 = vld [vmem:[%s2 + $0x20] sm:$0xf]
  %v743 = vld [vmem:[%s2 + $0x24] sm:$0xf]
  %v744 = vld [vmem:[%s2 + $0x28] sm:$0xf]
  %v745 = vld [vmem:[%s2 + $0x2c] sm:$0xf]
  %v746 = vld [vmem:[%s2 + $0x30] sm:$0xf]
  %v747 = vld [vmem:[%s2 + $0x34] sm:$0xf]
  %v748 = vld [vmem:[%s2 + $0x38] sm:$0xf]
  %v749 = vld [vmem:[%s2 + $0x3c] sm:$0xf]
  %v750 = vld [vmem:[%s2 + $0x40] sm:$0xf]
  %v751 = vld [vmem:[%s2 + $0x44] sm:$0xf]
  %v752 = vld [vmem:[%s2 + $0x48] sm:$0xf]
  %v753 = vld [vmem:[%s2 + $0x4c] sm:$0xf]
  %v754 = vld [vmem:[%s2 + $0x50] sm:$0xf]
  %v755 = vld [vmem:[%s2 + $0x54] sm:$0xf]
  %v756 = vld [vmem:[%s2 + $0x58] sm:$0xf]
  %v757 = vld [vmem:[%s2 + $0x5c] sm:$0xf]
  %v758 = vld [vmem:[%s2 + $0x60] sm:$0xf]
  %v759 = vld [vmem:[%s2 + $0x64] sm:$0xf]
  %v760 = vld [vmem:[%s2 + $0x68] sm:$0xf]
  %v761 = vld [vmem:[%s2 + $0x6c] sm:$0xf]
  %v762 = vld [vmem:[%s2 + $0x70] sm:$0xf]
  %v763 = vld [vmem:[%s2 + $0x74] sm:$0xf]
  %v764 = vld [vmem:[%s2 + $0x78] sm:$0xf]
  %v765 = vld [vmem:[%s2 + $0x7c] sm:$0xf]
  %v766 = vld [vmem:[%s2 + $0x80] sm:$0xf]
  %v767 = vld [vmem:[%s2 + $0x84] sm:$0xf]
  %v768 = vld [vmem:[%s2 + $0x88] sm:$0xf]
  %v769 = vld [vmem:[%s2 + $0x8c] sm:$0xf]
  %v770 = vld [vmem:[%s2 + $0x90] sm:$0xf]
  %v771 = vld [vmem:[%s2 + $0x94] sm:$0xf]
  %v772 = vld [vmem:[%s2 + $0x98] sm:$0xf]
  %v773 = vld [vmem:[%s2 + $0x9c] sm:$0xf]
  %v774 = vld [vmem:[%s2 + $0xa0] sm:$0xf]
  %v775 = vld [vmem:[%s2 + $0xa4] sm:$0xf]
  %v776 = vld [vmem:[%s2 + $0xa8] sm:$0xf]
  %v777 = vld [vmem:[%s2 + $0xac] sm:$0xf]
  %v778 = vld [vmem:[%s2 + $0xb0] sm:$0xf]
  %v779 = vld [vmem:[%s2 + $0xb4] sm:$0xf]
  %v780 = vld [vmem:[%s2 + $0xb8] sm:$0xf]
  %v781 = vld [vmem:[%s2 + $0xbc] sm:$0xf]
  %v782 = vld [vmem:[%s2 + $0xc0] sm:$0xf]
  %v783 = vld [vmem:[%s2 + $0xc4] sm:$0xf]
  %v784 = vld [vmem:[%s2 + $0xc8] sm:$0xf]
  %v785 = vld [vmem:[%s2 + $0xcc] sm:$0xf]
  %v786 = vld [vmem:[%s2 + $0xd0] sm:$0xf]
  %v787 = vld [vmem:[%s2 + $0xd4] sm:$0xf]
  %v788 = vld [vmem:[%s2 + $0xd8] sm:$0xf]
  %v789 = vld [vmem:[%s2 + $0xdc] sm:$0xf]
  %v790 = vld [vmem:[%s2 + $0xe0] sm:$0xf]
  %v791 = vld [vmem:[%s2 + $0xe4] sm:$0xf]
  %v792 = vld [vmem:[%s2 + $0xe8] sm:$0xf]
  %v793 = vld [vmem:[%s2 + $0xec] sm:$0xf]
  %v794 = vld [vmem:[%s2 + $0xf0] sm:$0xf]
  %v795 = vld [vmem:[%s2 + $0xf4] sm:$0xf]
  %v796 = vld [vmem:[%s2 + $0xf8] sm:$0xf]
  %v797 = vld [vmem:[%s2 + $0xfc] sm:$0xf]
  %v798 = vld [vmem:[%s3 + $0x2] ss:$0 sm:$0xff]
  %v863 = vunpack.c.l.b16 %v734
  %v864 = vunpack.c.l.b16 %v735
  %v865 = vunpack.c.l.b16 %v736
  %v866 = vunpack.c.l.b16 %v737
  %v867 = vunpack.c.l.b16 %v738
  %v868 = vunpack.c.l.b16 %v739
  %v869 = vunpack.c.l.b16 %v740
  %v870 = vunpack.c.l.b16 %v741
  %v871 = vunpack.c.l.b16 %v742
  %v872 = vunpack.c.l.b16 %v743
  %v873 = vunpack.c.l.b16 %v744
  %v874 = vunpack.c.l.b16 %v745
  %v875 = vunpack.c.l.b16 %v746
  %v876 = vunpack.c.l.b16 %v747
  %v877 = vunpack.c.l.b16 %v748
  %v878 = vunpack.c.l.b16 %v749
  %v879 = vunpack.c.l.b16 %v750
  %v880 = vunpack.c.l.b16 %v751
  %v881 = vunpack.c.l.b16 %v752
  %v882 = vunpack.c.l.b16 %v753
  %v883 = vunpack.c.l.b16 %v754
  %v884 = vunpack.c.l.b16 %v755
  %v885 = vunpack.c.l.b16 %v756
  %v886 = vunpack.c.l.b16 %v757
  %v887 = vunpack.c.l.b16 %v758
  %v888 = vunpack.c.l.b16 %v759
  %v889 = vunpack.c.l.b16 %v760
  %v890 = vunpack.c.l.b16 %v761
  %v891 = vunpack.c.l.b16 %v762
  %v892 = vunpack.c.l.b16 %v763
  %v893 = vunpack.c.l.b16 %v764
  %v894 = vunpack.c.l.b16 %v765
  %v895 = vunpack.c.l.b16 %v766
  %v896 = vunpack.c.l.b16 %v767
  %v897 = vunpack.c.l.b16 %v768
  %v898 = vunpack.c.l.b16 %v769
  %v899 = vunpack.c.l.b16 %v770
  %v900 = vunpack.c.l.b16 %v771
  %v901 = vunpack.c.l.b16 %v772
  %v902 = vunpack.c.l.b16 %v773
  %v903 = vunpack.c.l.b16 %v774
  %v904 = vunpack.c.l.b16 %v775
  %v905 = vunpack.c.l.b16 %v776
  %v906 = vunpack.c.l.b16 %v777
  %v907 = vunpack.c.l.b16 %v778
  %v908 = vunpack.c.l.b16 %v779
  %v909 = vunpack.c.l.b16 %v780
  %v910 = vunpack.c.l.b16 %v781
  %v911 = vunpack.c.l.b16 %v782
  %v912 = vunpack.c.l.b16 %v783
  %v913 = vunpack.c.l.b16 %v784
  %v914 = vunpack.c.l.b16 %v785
  %v915 = vunpack.c.l.b16 %v786
  %v916 = vunpack.c.l.b16 %v787
  %v917 = vunpack.c.l.b16 %v788
  %v918 = vunpack.c.l.b16 %v789
  %v919 = vunpack.c.l.b16 %v790
  %v920 = vunpack.c.l.b16 %v791
  %v921 = vunpack.c.l.b16 %v792
  %v922 = vunpack.c.l.b16 %v793
  %v923 = vunpack.c.l.b16 %v794
  %v924 = vunpack.c.l.b16 %v795
  %v925 = vunpack.c.l.b16 %v796
  %v926 = vunpack.c.l.b16 %v797
  %v927 = vpack.c.b16 %v864, %v863
  %v928 = vpack.c.b16 %v866, %v865
  %v929 = vpack.c.b16 %v868, %v867
  %v930 = vpack.c.b16 %v870, %v869
  %v931 = vpack.c.b16 %v872, %v871
  %v932 = vpack.c.b16 %v874, %v873
  %v933 = vpack.c.b16 %v876, %v875
  %v934 = vpack.c.b16 %v878, %v877
  %v935 = vpack.c.b16 %v880, %v879
  %v936 = vpack.c.b16 %v882, %v881
  %v937 = vpack.c.b16 %v884, %v883
  %v938 = vpack.c.b16 %v886, %v885
  %v939 = vpack.c.b16 %v888, %v887
  %v940 = vpack.c.b16 %v890, %v889
  %v941 = vpack.c.b16 %v892, %v891
  %v942 = vpack.c.b16 %v894, %v893
  %v943 = vpack.c.b16 %v896, %v895
  %v944 = vpack.c.b16 %v898, %v897
  %v945 = vpack.c.b16 %v900, %v899
  %v946 = vpack.c.b16 %v902, %v901
  %v947 = vpack.c.b16 %v904, %v903
  %v948 = vpack.c.b16 %v906, %v905
  %v949 = vpack.c.b16 %v908, %v907
  %v950 = vpack.c.b16 %v910, %v909
  %v951 = vpack.c.b16 %v912, %v911
  %v952 = vpack.c.b16 %v914, %v913
  %v953 = vpack.c.b16 %v916, %v915
  %v954 = vpack.c.b16 %v918, %v917
  %v955 = vpack.c.b16 %v920, %v919
  %v956 = vpack.c.b16 %v922, %v921
  %v957 = vpack.c.b16 %v924, %v923
  %v958 = vpack.c.b16 %v926, %v925
  %991 = vmatprep.subr.bf16.mxu0 0
  %992 = vmatpush1.bf16.msra.mxu0 %v927
  %993 = vmatprep.subr.bf16.mxu0 0
  %994 = vmatpush1.bf16.msra.mxu0 %v928
  %995 = vmatprep.subr.bf16.mxu0 0
  %996 = vmatpush1.bf16.msra.mxu0 %v929
  %997 = vmatprep.subr.bf16.mxu0 0
  %998 = vmatpush1.bf16.msra.mxu0 %v930
  %999 = vmatprep.subr.bf16.mxu0 0
  %1000 = vmatpush1.bf16.msra.mxu0 %v931
  %1001 = vmatprep.subr.bf16.mxu0 0
  %1002 = vmatpush1.bf16.msra.mxu0 %v932
  %1003 = vmatprep.subr.bf16.mxu0 0
  %1004 = vmatpush1.bf16.msra.mxu0 %v933
  %1005 = vmatprep.subr.bf16.mxu0 0
  %1006 = vmatpush1.bf16.msra.mxu0 %v934
  %1007 = vmatprep.subr.bf16.mxu0 0
  %1008 = vmatpush1.bf16.msra.mxu0 %v935
  %1009 = vmatprep.subr.bf16.mxu0 0
  %1010 = vmatpush1.bf16.msra.mxu0 %v936
  %1011 = vmatprep.subr.bf16.mxu0 0
  %1012 = vmatpush1.bf16.msra.mxu0 %v937
  %1013 = vmatprep.subr.bf16.mxu0 0
  %1014 = vmatpush1.bf16.msra.mxu0 %v938
  %1015 = vmatprep.subr.bf16.mxu0 0
  %1016 = vmatpush1.bf16.msra.mxu0 %v939
  %1017 = vmatprep.subr.bf16.mxu0 0
  %1018 = vmatpush1.bf16.msra.mxu0 %v940
  %1019 = vmatprep.subr.bf16.mxu0 0
  %1020 = vmatpush1.bf16.msra.mxu0 %v941
  %1021 = vmatprep.subr.bf16.mxu0 0
  %1022 = vmatpush1.bf16.msra.mxu0 %v942
  %1023 = vmatprep.mubr.bf16.mxu0 %v731
  %1024 = vmatmul.mubr.bf16.gmra.mrb[0].mxu0 %v730
  %v1025 = vpop.f32.mrb[0].mxu0
  %v1026 = vadd.f32 %v798, %v1025
  %v1027 = vpop.f32.mrb[0].mxu0
  %v1028 = vpop.f32.mrb[0].mxu0
  %v1029 = vpop.f32.mrb[0].mxu0
  %1030 = vdwg.mxu0
  %1031 = vmatprep.subr.bf16.mxu0 0
  %1032 = vmatpush1.bf16.msra.mxu0 %v943
  %1033 = vmatprep.subr.bf16.mxu0 0
  %1034 = vmatpush1.bf16.msra.mxu0 %v944
  %1035 = vmatprep.subr.bf16.mxu0 0
  %1036 = vmatpush1.bf16.msra.mxu0 %v945
  %1037 = vmatprep.subr.bf16.mxu0 0
  %1038 = vmatpush1.bf16.msra.mxu0 %v946
  %1039 = vmatprep.subr.bf16.mxu0 0
  %1040 = vmatpush1.bf16.msra.mxu0 %v947
  %1041 = vmatprep.subr.bf16.mxu0 0
  %1042 = vmatpush1.bf16.msra.mxu0 %v948
  %1043 = vmatprep.subr.bf16.mxu0 0
  %1044 = vmatpush1.bf16.msra.mxu0 %v949
  %1045 = vmatprep.subr.bf16.mxu0 0
  %1046 = vmatpush1.bf16.msra.mxu0 %v950
  %1047 = vmatprep.subr.bf16.mxu0 0
  %1048 = vmatpush1.bf16.msra.mxu0 %v951
  %1049 = vmatprep.subr.bf16.mxu0 0
  %1050 = vmatpush1.bf16.msra.mxu0 %v952
  %1051 = vmatprep.subr.bf16.mxu0 0
  %1052 = vmatpush1.bf16.msra.mxu0 %v953
  %1053 = vmatprep.subr.bf16.mxu0 0
  %1054 = vmatpush1.bf16.msra.mxu0 %v954
  %1055 = vmatprep.subr.bf16.mxu0 0
  %1056 = vmatpush1.bf16.msra.mxu0 %v955
  %1057 = vmatprep.subr.bf16.mxu0 0
  %1058 = vmatpush1.bf16.msra.mxu0 %v956
  %1059 = vmatprep.subr.bf16.mxu0 0
  %1060 = vmatpush1.bf16.msra.mxu0 %v957
  %1061 = vmatprep.subr.bf16.mxu0 0
  %1062 = vmatpush1.bf16.msra.mxu0 %v958
  %1063 = vmatprep.mubr.bf16.mxu0 %v733
  %1064 = vmatmul.mubr.bf16.gmra.mrb[0].mxu0 %v732
  %v1065 = vpop.f32.mrb[0].mxu0
  %v1066 = vadd.f32 %v1026, %v1065
  %v1067 = vpop.f32.mrb[0].mxu0
  %v1068 = vpop.f32.mrb[0].mxu0
  %v1069 = vpop.f32.mrb[0].mxu0
  %1070 = vdwg.mxu0
  %v1071 = vmax.f32 %v1066, 0.0
  %v1072 = vld [vmem:[%s3 + $0x3] ss:$0 sm:$0xff]
  %v1073 = vmul.f32 %v1071, %v1072
  %vm1074 = vcmask 1041408
  %v1075 = vsel %vm1074, %v1073, 0.0
  %1076 = vadd.xlane.f32.xlu0 %v1075
  %v1077 = vpop.xlane.xlu0 %1076
  %v1078 = vld [vmem:[%s3 + $0x4] ss:$0 sm:$0xff]
  %v1079 = vadd.f32 %v1077, %v1078
  %vm1080 = vcmask 1024
  %1081 = vst.msk [vmem:[%s4] sm:$0x3] %vm1080, %v1079
  // Predicated region
  $region18: #{pm_single_net_forward.1} parent=0 // pred_check
    _
  $region19: #{pm_single_net_forward.1} parent=0 // pred_check_branch
    %1083 = sbr.rel (0) target = $region21
  $region20: #{pm_single_net_forward.1} parent=0 // pred_region
    _
  $region21: #{pm_single_net_forward.1} parent=0 // pred_fallthru
    _
  // Predicated region
  $region22: #{pm_single_net_forward.1} parent=0 // pred_check
    _
  $region23: #{pm_single_net_forward.1} parent=0 // pred_check_branch
    %1085 = sbr.rel (0) target = $region25
  $region24: #{pm_single_net_forward.1} parent=0 // pred_region
    _
  $region25: #{pm_single_net_forward.1} parent=0 // pred_fallthru
    _

</llo_original>
